<compile_context>
chip_gen: v7x
topology: tpu7x:2x2x1
jax: 0.10.0
libtpu: 0.0.40
codegen_flags: <defaults>
</compile_context>

<pallas_src>
import functools

import jax
import jax.numpy as jnp
from jax.experimental import pallas as pl
from jax.experimental.pallas import tpu as pltpu


# ----------------------------------------------------------------------------
# Pallas kernel: one fused matmul + bias (+ optional ReLU)
# ----------------------------------------------------------------------------
def _matmul_bias_kernel(lhs_ref, wt_ref, b_ref, o_ref, *, relu):
    """o = lhs @ wt + bias (+ReLU).   lhs:(M,Kp)  wt:(Kp,N)  b:(1,N)f32  o:(M,N)f32."""
    acc = jnp.dot(lhs_ref[...], wt_ref[...], preferred_element_type=jnp.float32)
    acc = acc + b_ref[...]                     # single bias broadcast (no unrolled loop)
    if relu:
        acc = jnp.maximum(acc, 0.0)
    o_ref[...] = acc


# ----------------------------------------------------------------------------
# One-time conv prep (hoisted out of the recurrent step)
# ----------------------------------------------------------------------------
def prepare_conv_toeplitz(w_oihw, bias, W, mxu_dtype):
    """Fold the (kw, ci) taps and the W output-pixel shift structure into a stacked
    block-Toeplitz weight (K*Wp*Cin padded to 128-multiple, W*cp) + tiled bias row."""
    Cout, Cin, K, _ = w_oihw.shape
    assert K % 2 == 1
    pad = K // 2
    Wp = W + 2 * pad
    cp = max(8, -(-Cout // 8) * 8)             # pad Cout so the output is lane-friendly
    assert (W * cp) % 128 == 0, "lane-dense output requires W*cp to be a multiple of 128"

    # wk[kh, kw*Cin+ci, co] = w_oihw[co, ci, kh, kw]
    wk = jnp.transpose(w_oihw, (2, 3, 1, 0)).reshape(K, K * Cin, Cout)
    wk = jnp.pad(wk, ((0, 0), (0, 0), (0, cp - Cout)))
    # wt[kh, wp*Cin+ci, w0*cp+co] = w[co, ci, kh, wp-w0] for 0 <= wp-w0 < K else 0
    wt = jnp.concatenate(
        [jnp.pad(wk, ((0, 0), (w0 * Cin, (W - 1 - w0) * Cin), (0, 0))) for w0 in range(W)],
        axis=2)                                 # (K, Wp*Cin, W*cp)

    kdim = K * Wp * Cin
    kpad = -(-kdim // 128) * 128                # align MXU contraction depth (432 -> 512)
    wt = jnp.pad(wt.reshape(kdim, W * cp), ((0, kpad - kdim), (0, 0))).astype(mxu_dtype)
    brow = jnp.tile(jnp.pad(bias, (0, cp - Cout)), W).reshape(1, W * cp).astype(jnp.float32)
    return dict(wt=wt, brow=brow, K=K, pad=pad, cp=cp, Cout=Cout, W=W,
                kdim=kdim, kpad=kpad, mxu_dtype=mxu_dtype)


def conv2d_toeplitz_nhwc(x, prep, relu=False):
    """PyTorch-style Conv2d (stride 1, padding K//2, K odd) on NHWC input via one fused
    Pallas matmul: (B*H, Kpad) @ (Kpad, W*cp) + bias (+ReLU), f32 accumulation."""
    B, H, W, Cin = x.shape
    assert W == prep["W"]
    K, pad, cp, Cout = prep["K"], prep["pad"], prep["cp"], prep["Cout"]
    kdim, kpad = prep["kdim"], prep["kpad"]
    Wp = W + 2 * pad

    # im2col LHS: lhs[b*H+h, kh*Wp*Cin + wp*Cin + ci] = x_padded[b, h+kh, wp, ci]
    xp = jnp.pad(x, ((0, 0), (pad, pad), (pad, pad), (0, 0)))
    xp = xp.reshape(B, H + 2 * pad, Wp * Cin)
    lhs = jnp.concatenate([xp[:, kh:kh + H, :] for kh in range(K)], axis=-1)
    lhs = lhs.reshape(B * H, kdim)
    lhs = jnp.pad(lhs, ((0, 0), (0, kpad - kdim))).astype(prep["mxu_dtype"])

    M, N = B * H, W * cp
    itemsize = jnp.dtype(prep["mxu_dtype"]).itemsize
    cost = pl.CostEstimate(
        flops=2 * M * kpad * N,
        transcendentals=0,
        bytes_accessed=(M * kpad + kpad * N) * itemsize + (N + M * N) * 4)

    out = pl.pallas_call(
        functools.partial(_matmul_bias_kernel, relu=relu),
        out_shape=jax.ShapeDtypeStruct((M, N), jnp.float32),
        grid=(1,),
        in_specs=[
            pl.BlockSpec((M, kpad), lambda i: (0, 0)),
            pl.BlockSpec((kpad, N), lambda i: (0, 0)),
            pl.BlockSpec((1, N), lambda i: (0, 0)),
        ],
        out_specs=pl.BlockSpec((M, N), lambda i: (0, 0)),
        compiler_params=pltpu.CompilerParams(dimension_semantics=("arbitrary",)),
        cost_estimate=cost,
    )(lhs, prep["wt"], prep["brow"])
    # TODO(synk): for production spatial sizes, tile the grid over (H, W) with a fixed
    # Wt (Wt*cp a multiple of 256 on v6e/v7x, 128 on v5e), reuse the shift-invariant
    # Toeplitz tile, VMEM f32 accumulator with pl.when init (reduction axis last),
    # budget tiles against 64 MiB VMEM on v7x (set vmem_limit_bytes) vs 128 MiB on
    # v5e/v6e, and split the M/batch dim across the two v7x TensorCores via
    # dimension_semantics=("parallel", ...).
    return out.reshape(B, H, W, cp)[..., :Cout]


# ----------------------------------------------------------------------------
# MXU-friendly resize / grid_sample matching PyTorch semantics
# ----------------------------------------------------------------------------
def _interp_matrix(out_size, in_size, align_corners):
    """(out_size, in_size) bilinear interpolation matrix matching F.interpolate."""
    dst = jnp.arange(out_size, dtype=jnp.float32)
    if align_corners:
        scale = (in_size - 1) / (out_size - 1) if out_size > 1 else 0.0
        src = dst * scale
    else:
        src = jnp.maximum((dst + 0.5) * (in_size / out_size) - 0.5, 0.0)
    i0 = jnp.clip(jnp.floor(src).astype(jnp.int32), 0, in_size - 1)
    i1 = jnp.minimum(i0 + 1, in_size - 1)
    w = src - i0.astype(jnp.float32)
    return (jax.nn.one_hot(i0, in_size, dtype=jnp.float32) * (1.0 - w)[:, None]
            + jax.nn.one_hot(i1, in_size, dtype=jnp.float32) * w[:, None])


def resize_bilinear_nhwc(x, out_h, out_w, align_corners):
    """Separable matmul form of F.interpolate(mode='bilinear') on NHWC input."""
    ry = _interp_matrix(out_h, x.shape[1], align_corners)     # (out_h, H)  constant
    rx = _interp_matrix(out_w, x.shape[2], align_corners)     # (out_w, W)  constant
    t = jnp.einsum("ph,bhwc->bpwc", ry, x)
    return jnp.einsum("qw,bpwc->bpqc", rx, t)


def grid_sample_bilinear_zeros_nhwc(x, grid):
    """F.grid_sample(mode='bilinear', padding_mode='zeros', align_corners=False) in
    one-hot-matmul form (MXU-friendly at small H*W)."""
    B, H, W, C = x.shape
    gx, gy = grid[..., 0], grid[..., 1]
    ix = ((gx + 1.0) * W - 1.0) * 0.5
    iy = ((gy + 1.0) * H - 1.0) * 0.5
    x0 = jnp.floor(ix).astype(jnp.int32)
    y0 = jnp.floor(iy).astype(jnp.int32)
    x1, y1 = x0 + 1, y0 + 1
    wx = ix - x0.astype(jnp.float32)
    wy = iy - y0.astype(jnp.float32)

    def tap(yi, xi, w):
        valid = (xi >= 0) & (xi < W) & (yi >= 0) & (yi < H)
        idx = jnp.clip(yi, 0, H - 1) * W + jnp.clip(xi, 0, W - 1)
        w = jnp.where(valid, w, 0.0)
        return jax.nn.one_hot(idx, H * W, dtype=jnp.float32) * w[..., None]

    m = (tap(y0, x0, (1 - wy) * (1 - wx)) + tap(y0, x1, (1 - wy) * wx)
         + tap(y1, x0, wy * (1 - wx)) + tap(y1, x1, wy * wx))   # (B, Ho, Wo, H*W)
    # TODO(synk): for production H*W, replace the one-hot matmul with a scalar-prefetch
    # Pallas gather kernel (data-dependent DMA); the warp indices are runtime values.
    return jnp.einsum("bpqk,bkc->bpqc", m, x.reshape(B, H * W, C))


# ----------------------------------------------------------------------------
# RDC forward (decoder='vanilla'), NHWC internally, NCHW at the boundary
# ----------------------------------------------------------------------------
def make_rdc_forward(params, x_shape, h_shape):
    """Builds the jitted forward; Toeplitz weights / bias rows are prepared once per
    parameter set here (outside the recurrent step) and reused on every call."""
    _, _, Hx, Wx = x_shape
    _, _, Hh, Wh = h_shape

    # flowconv: f32 MXU operands (flow feeds warp coordinates -> keep full precision).
    flow_prep = prepare_conv_toeplitz(params["flow_w"], params["flow_b"], W=Wx,
                                      mxu_dtype=jnp.float32)
    # vanilla_conv: bf16 MXU operands, f32 accumulate/epilogue.
    van_prep = prepare_conv_toeplitz(params["van_w"], params["van_b"], W=Wx,
                                     mxu_dtype=jnp.bfloat16)

    def forward(x_cur, h_pre):
        # Single NCHW -> NHWC transpose at entry (and one back at exit).
        x = jnp.transpose(x_cur, (0, 2, 3, 1))                  # (B, Hx, Wx, C)
        h = jnp.transpose(h_pre, (0, 2, 3, 1))                  # (B, Hh, Wh, C)

        # _flow_align_module(x_cur, h_pre)
        h_up = resize_bilinear_nhwc(h, Hx, Wx, align_corners=False)
        fuse = jnp.concatenate([x, h_up], axis=-1)              # (B, Hx, Wx, 2C)
        flow = conv2d_toeplitz_nhwc(fuse, flow_prep)            # (B, Hx, Wx, 2)
        flow = resize_bilinear_nhwc(flow, Hh, Wh, align_corners=False)

        grid_y, grid_x = jnp.meshgrid(jnp.arange(Hh), jnp.arange(Wh), indexing="ij")
        grid = jnp.stack([grid_x, grid_y], axis=2).astype(h.dtype)   # (Hh, Wh, 2)
        vgrid = grid[None] + flow
        vgrid_x = 2.0 * vgrid[..., 0] / max(Wh - 1, 1) - 1.0
        vgrid_y = 2.0 * vgrid[..., 1] / max(Hh - 1, 1) - 1.0
        vgrid_scaled = jnp.stack([vgrid_x, vgrid_y], axis=3)
        h_aligned = grid_sample_bilinear_zeros_nhwc(h, vgrid_scaled)  # (B, Hh, Wh, C)

        # forward body (decoder='vanilla')
        h_pre_up = resize_bilinear_nhwc(h_aligned, Hx, Wx, align_corners=True)
        combined = jnp.concatenate([h_pre_up, x], axis=-1)      # (B, Hx, Wx, 2C)
        h_cur = conv2d_toeplitz_nhwc(combined, van_prep, relu=True)
        return jnp.transpose(h_cur, (0, 3, 1, 2))               # back to NCHW

    return jax.jit(forward)


if __name__ == "__main__":
    key = jax.random.PRNGKey(0)
    hidden_dim, kernel_size = 4, 3             # RDC(hidden_dim=4, kernel_size=3, bias=True)
    B = 2
    Hx = Wx = 16                                # x_cur spatial size
    Hh = Wh = 8                                 # h_pre spatial size
    k1, k2, k3, k4, k5, k6 = jax.random.split(key, 6)

    x_cur = jax.random.normal(k1, (B, hidden_dim, Hx, Wx), jnp.float32)
    h_pre = jax.random.normal(k2, (B, hidden_dim, Hh, Wh), jnp.float32)

    params = {
        # flowconv: Conv2d(2*n_classes -> 2, k=3, pad=1), OIHW
        "flow_w": 0.1 * jax.random.normal(k3, (2, 2 * hidden_dim, 3, 3), jnp.float32),
        "flow_b": 0.1 * jax.random.normal(k4, (2,), jnp.float32),
        # vanilla_conv: Conv2d(2*hidden -> hidden, k=K, pad=K//2), OIHW
        "van_w": 0.1 * jax.random.normal(
            k5, (hidden_dim, 2 * hidden_dim, kernel_size, kernel_size), jnp.float32),
        "van_b": 0.1 * jax.random.normal(k6, (hidden_dim,), jnp.float32),
    }

    # TODO(synk): gru/lstm decoder branches and their convs are unused for decoder='vanilla'.
    rdc_forward = make_rdc_forward(params, x_cur.shape, h_pre.shape)
    out = rdc_forward(x_cur, h_pre)
    jax.block_until_ready(out)
    assert out.shape == (B, hidden_dim, Hx, Wx)
    assert bool(jnp.all(out >= 0.0))           # ReLU output
    print("KERNEL_OK")
</pallas_src>

<mosaic_0001>
module attributes {stable_mosaic.version = 11 : i64} {
  func.func @_matmul_bias_kernel(%arg0: i32, %arg1: memref<32x512xf32, #tpu.memory_space<vmem>>, %arg2: memref<512x128xf32, #tpu.memory_space<vmem>>, %arg3: memref<1x128xf32, #tpu.memory_space<vmem>>, %arg4: memref<32x128xf32, #tpu.memory_space<vmem>>) attributes {dimension_semantics = [#tpu.dimension_semantics<arbitrary>], iteration_bounds = array<i64: 1>, scalar_prefetch = 0 : i64, scratch_operands = 0 : i64, tpu.core_type = #tpu.core_type<tc>, window_params = [{pipeline_mode = #tpu.pipeline_mode<synchronous>, transform_indices = @transform_0, window_bounds = array<i64: 32, 512>}, {pipeline_mode = #tpu.pipeline_mode<synchronous>, transform_indices = @transform_1, window_bounds = array<i64: 512, 128>}, {pipeline_mode = #tpu.pipeline_mode<synchronous>, transform_indices = @transform_2, window_bounds = array<i64: 1, 128>}, {pipeline_mode = #tpu.pipeline_mode<synchronous>, transform_indices = @transform_3, window_bounds = array<i64: 32, 128>}]} {
    %c0 = arith.constant 0 : index
    %c0_0 = arith.constant 0 : index
    %0 = vector.load %arg1[%c0, %c0_0] : memref<32x512xf32, #tpu.memory_space<vmem>>, vector<32x512xf32>
    %c0_1 = arith.constant 0 : index
    %c0_2 = arith.constant 0 : index
    %1 = vector.load %arg2[%c0_1, %c0_2] : memref<512x128xf32, #tpu.memory_space<vmem>>, vector<512x128xf32>
    %cst = arith.constant dense<0.000000e+00> : vector<32x128xf32>
    %2 = tpu.matmul %0, %1, %cst {dimension_numbers = #tpu.dot_dimension_numbers<[1], [0], [0], [1], [0, 0, 1, 1], [], []>} : vector<32x512xf32>, vector<512x128xf32>, vector<32x128xf32> -> vector<32x128xf32>
    %c0_3 = arith.constant 0 : index
    %c0_4 = arith.constant 0 : index
    %3 = vector.load %arg3[%c0_3, %c0_4] : memref<1x128xf32, #tpu.memory_space<vmem>>, vector<1x128xf32>
    %4 = vector.broadcast %3 : vector<1x128xf32> to vector<32x128xf32>
    %5 = arith.addf %2, %4 : vector<32x128xf32>
    %c0_5 = arith.constant 0 : index
    %c0_6 = arith.constant 0 : index
    %6 = vector.load %arg4[%c0_5, %c0_6] : memref<32x128xf32, #tpu.memory_space<vmem>>, vector<32x128xf32>
    tpu.vector_store %arg4[%c0_5, %c0_6], %5 {strides = array<i32>} : memref<32x128xf32, #tpu.memory_space<vmem>>, vector<32x128xf32>,
    return
  }
  func.func @transform_0(%arg0: i32) -> (i32, i32) {
    %c0_i32 = arith.constant 0 : i32
    %c0_i32_0 = arith.constant 0 : i32
    %c0_i32_1 = arith.constant 0 : i32
    return %c0_i32, %c0_i32_0 : i32, i32
  }
  func.func @transform_1(%arg0: i32) -> (i32, i32) {
    %c0_i32 = arith.constant 0 : i32
    %c0_i32_0 = arith.constant 0 : i32
    %c0_i32_1 = arith.constant 0 : i32
    return %c0_i32, %c0_i32_0 : i32, i32
  }
  func.func @transform_2(%arg0: i32) -> (i32, i32) {
    %c0_i32 = arith.constant 0 : i32
    %c0_i32_0 = arith.constant 0 : i32
    %c0_i32_1 = arith.constant 0 : i32
    return %c0_i32, %c0_i32_0 : i32, i32
  }
  func.func @transform_3(%arg0: i32) -> (i32, i32) {
    %c0_i32 = arith.constant 0 : i32
    %c0_i32_0 = arith.constant 0 : i32
    %c0_i32_1 = arith.constant 0 : i32
    return %c0_i32, %c0_i32_0 : i32, i32
  }
}

module attributes {stable_mosaic.version = 11 : i64} {
  func.func @_matmul_bias_kernel(%arg0: i32, %arg1: memref<32x512xbf16, #tpu.memory_space<vmem>>, %arg2: memref<512x128xbf16, #tpu.memory_space<vmem>>, %arg3: memref<1x128xf32, #tpu.memory_space<vmem>>, %arg4: memref<32x128xf32, #tpu.memory_space<vmem>>) attributes {dimension_semantics = [#tpu.dimension_semantics<arbitrary>], iteration_bounds = array<i64: 1>, scalar_prefetch = 0 : i64, scratch_operands = 0 : i64, tpu.core_type = #tpu.core_type<tc>, window_params = [{pipeline_mode = #tpu.pipeline_mode<synchronous>, transform_indices = @transform_0, window_bounds = array<i64: 32, 512>}, {pipeline_mode = #tpu.pipeline_mode<synchronous>, transform_indices = @transform_1, window_bounds = array<i64: 512, 128>}, {pipeline_mode = #tpu.pipeline_mode<synchronous>, transform_indices = @transform_2, window_bounds = array<i64: 1, 128>}, {pipeline_mode = #tpu.pipeline_mode<synchronous>, transform_indices = @transform_3, window_bounds = array<i64: 32, 128>}]} {
    %c0 = arith.constant 0 : index
    %c0_0 = arith.constant 0 : index
    %0 = vector.load %arg1[%c0, %c0_0] : memref<32x512xbf16, #tpu.memory_space<vmem>>, vector<32x512xbf16>
    %c0_1 = arith.constant 0 : index
    %c0_2 = arith.constant 0 : index
    %1 = vector.load %arg2[%c0_1, %c0_2] : memref<512x128xbf16, #tpu.memory_space<vmem>>, vector<512x128xbf16>
    %cst = arith.constant dense<0.000000e+00> : vector<32x128xf32>
    %2 = tpu.matmul %0, %1, %cst {dimension_numbers = #tpu.dot_dimension_numbers<[1], [0], [0], [1], [0, 0, 1, 1], [], []>} : vector<32x512xbf16>, vector<512x128xbf16>, vector<32x128xf32> -> vector<32x128xf32>
    %c0_3 = arith.constant 0 : index
    %c0_4 = arith.constant 0 : index
    %3 = vector.load %arg3[%c0_3, %c0_4] : memref<1x128xf32, #tpu.memory_space<vmem>>, vector<1x128xf32>
    %4 = vector.broadcast %3 : vector<1x128xf32> to vector<32x128xf32>
    %5 = arith.addf %2, %4 : vector<32x128xf32>
    %cst_5 = arith.constant 0.000000e+00 : f32
    %6 = vector.broadcast %cst_5 : f32 to vector<32x128xf32>
    %7 = arith.maximumf %5, %6 : vector<32x128xf32>
    %c0_6 = arith.constant 0 : index
    %c0_7 = arith.constant 0 : index
    %8 = vector.load %arg4[%c0_6, %c0_7] : memref<32x128xf32, #tpu.memory_space<vmem>>, vector<32x128xf32>
    tpu.vector_store %arg4[%c0_6, %c0_7], %7 {strides = array<i32>} : memref<32x128xf32, #tpu.memory_space<vmem>>, vector<32x128xf32>,
    return
  }
  func.func @transform_0(%arg0: i32) -> (i32, i32) {
    %c0_i32 = arith.constant 0 : i32
    %c0_i32_0 = arith.constant 0 : i32
    %c0_i32_1 = arith.constant 0 : i32
    return %c0_i32, %c0_i32_0 : i32, i32
  }
  func.func @transform_1(%arg0: i32) -> (i32, i32) {
    %c0_i32 = arith.constant 0 : i32
    %c0_i32_0 = arith.constant 0 : i32
    %c0_i32_1 = arith.constant 0 : i32
    return %c0_i32, %c0_i32_0 : i32, i32
  }
  func.func @transform_2(%arg0: i32) -> (i32, i32) {
    %c0_i32 = arith.constant 0 : i32
    %c0_i32_0 = arith.constant 0 : i32
    %c0_i32_1 = arith.constant 0 : i32
    return %c0_i32, %c0_i32_0 : i32, i32
  }
  func.func @transform_3(%arg0: i32) -> (i32, i32) {
    %c0_i32 = arith.constant 0 : i32
    %c0_i32_0 = arith.constant 0 : i32
    %c0_i32_1 = arith.constant 0 : i32
    return %c0_i32, %c0_i32_0 : i32, i32
  }
}

</mosaic_0001>

<llo_original>
// kernel: forward.2
$region0: #{forward.2}
  #allocation0 [shape = 'u32[]', space=smem, size = 0x4, offset = 0x4, fixed_abs, tag = 'smem constant byte address 0x4 - core index']
  #allocation1 [shape = 'u32[144,128]{1,0:T(1,128)}', space=vmem, size = 0x12000, scoped, tag = 'internal scratch']
  %s0 = inlined_call_operand.vmem [shape: f32[32,512], index: 0, kind: input, shape index: {}]
  %s1 = inlined_call_operand.vmem [shape: f32[512,128], index: 1, kind: input, shape index: {}]
  %s2 = inlined_call_operand.vmem [shape: f32[1,128], index: 2, kind: input, shape index: {}]
  %s3 = inlined_call_operand.vmem [shape: f32[32,128], index: 3, kind: output, shape index: {}]
  %s4 = sld [smem:[#allocation0]]
  $region22: #{forward.2} parent=0
    _
  %s6 = ssub.s32 1, %s4
  %s7 = scalar_select 0, %s6, %s4
  // Predicated region
  $region2: #{forward.2} parent=0 // pred_check
    _
  $region3: #{forward.2} parent=0 // pred_check_branch
    %9 = sbr.rel (0) target = $region5
  $region4: #{forward.2} parent=0 // pred_region
    _
  $region5: #{forward.2} parent=0 // pred_fallthru
    _
  // Predicated region
  $region6: #{forward.2} parent=0 // pred_check
    _
  $region7: #{forward.2} parent=0 // pred_check_branch
    %11 = sbr.rel (0) target = $region9
  $region8: #{forward.2} parent=0 // pred_region
    _
  $region9: #{forward.2} parent=0 // pred_fallthru
    _
  // Predicated region
  $region10: #{forward.2} parent=0 // pred_check
    _
  $region11: #{forward.2} parent=0 // pred_check_branch
    %13 = sbr.rel (0) target = $region13
  $region12: #{forward.2} parent=0 // pred_region
    _
  $region13: #{forward.2} parent=0 // pred_fallthru
    _
  %v14 = vld [vmem:[%s0] sm:$0xff]
  %v15 = vld [vmem:[%s0 + $0x8] sm:$0xff]
  %v16 = vld [vmem:[%s0 + $0x10] sm:$0xff]
  %v17 = vld [vmem:[%s0 + $0x18] sm:$0xff]
  %v18 = vld [vmem:[%s0 + $0x20] sm:$0xff]
  %v19 = vld [vmem:[%s0 + $0x28] sm:$0xff]
  %v20 = vld [vmem:[%s0 + $0x30] sm:$0xff]
  %v21 = vld [vmem:[%s0 + $0x38] sm:$0xff]
  %v22 = vld [vmem:[%s0 + $0x40] sm:$0xff]
  %v23 = vld [vmem:[%s0 + $0x48] sm:$0xff]
  %v24 = vld [vmem:[%s0 + $0x50] sm:$0xff]
  %v25 = vld [vmem:[%s0 + $0x58] sm:$0xff]
  %v26 = vld [vmem:[%s0 + $0x60] sm:$0xff]
  %v27 = vld [vmem:[%s0 + $0x68] sm:$0xff]
  %v28 = vld [vmem:[%s0 + $0x70] sm:$0xff]
  %v29 = vld [vmem:[%s0 + $0x78] sm:$0xff]
  %v30 = vld [vmem:[%s1] sm:$0xff]
  %v31 = vld [vmem:[%s1 + $0x8] sm:$0xff]
  %v32 = vld [vmem:[%s1 + $0x10] sm:$0xff]
  %v33 = vld [vmem:[%s1 + $0x18] sm:$0xff]
  %v34 = vld [vmem:[%s1 + $0x20] sm:$0xff]
  %v35 = vld [vmem:[%s1 + $0x28] sm:$0xff]
  %v36 = vld [vmem:[%s1 + $0x30] sm:$0xff]
  %v37 = vld [vmem:[%s1 + $0x38] sm:$0xff]
  %v38 = vld [vmem:[%s1 + $0x40] sm:$0xff]
  %v39 = vld [vmem:[%s1 + $0x48] sm:$0xff]
  %v40 = vld [vmem:[%s1 + $0x50] sm:$0xff]
  %v41 = vld [vmem:[%s1 + $0x58] sm:$0xff]
  %v42 = vld [vmem:[%s1 + $0x60] sm:$0xff]
  %v43 = vld [vmem:[%s1 + $0x68] sm:$0xff]
  %v44 = vld [vmem:[%s1 + $0x70] sm:$0xff]
  %v45 = vld [vmem:[%s1 + $0x78] sm:$0xff]
  %v46 = vld [vmem:[%s1 + $0x80] sm:$0xff]
  %v47 = vld [vmem:[%s1 + $0x88] sm:$0xff]
  %v48 = vld [vmem:[%s1 + $0x90] sm:$0xff]
  %v49 = vld [vmem:[%s1 + $0x98] sm:$0xff]
  %v50 = vld [vmem:[%s1 + $0xa0] sm:$0xff]
  %v51 = vld [vmem:[%s1 + $0xa8] sm:$0xff]
  %v52 = vld [vmem:[%s1 + $0xb0] sm:$0xff]
  %v53 = vld [vmem:[%s1 + $0xb8] sm:$0xff]
  %v54 = vld [vmem:[%s1 + $0xc0] sm:$0xff]
  %v55 = vld [vmem:[%s1 + $0xc8] sm:$0xff]
  %v56 = vld [vmem:[%s1 + $0xd0] sm:$0xff]
  %v57 = vld [vmem:[%s1 + $0xd8] sm:$0xff]
  %v58 = vld [vmem:[%s1 + $0xe0] sm:$0xff]
  %v59 = vld [vmem:[%s1 + $0xe8] sm:$0xff]
  %v60 = vld [vmem:[%s1 + $0xf0] sm:$0xff]
  %v61 = vld [vmem:[%s1 + $0xf8] sm:$0xff]
  %v62 = vld [vmem:[%s1 + $0x100] sm:$0xff]
  %v63 = vld [vmem:[%s1 + $0x108] sm:$0xff]
  %v64 = vld [vmem:[%s1 + $0x110] sm:$0xff]
  %v65 = vld [vmem:[%s1 + $0x118] sm:$0xff]
  %v66 = vld [vmem:[%s1 + $0x120] sm:$0xff]
  %v67 = vld [vmem:[%s1 + $0x128] sm:$0xff]
  %v68 = vld [vmem:[%s1 + $0x130] sm:$0xff]
  %v69 = vld [vmem:[%s1 + $0x138] sm:$0xff]
  %v70 = vld [vmem:[%s1 + $0x140] sm:$0xff]
  %v71 = vld [vmem:[%s1 + $0x148] sm:$0xff]
  %v72 = vld [vmem:[%s1 + $0x150] sm:$0xff]
  %v73 = vld [vmem:[%s1 + $0x158] sm:$0xff]
  %v74 = vld [vmem:[%s1 + $0x160] sm:$0xff]
  %v75 = vld [vmem:[%s1 + $0x168] sm:$0xff]
  %v76 = vld [vmem:[%s1 + $0x170] sm:$0xff]
  %v77 = vld [vmem:[%s1 + $0x178] sm:$0xff]
  %v78 = vld [vmem:[%s1 + $0x180] sm:$0xff]
  %v79 = vld [vmem:[%s1 + $0x188] sm:$0xff]
  %v80 = vld [vmem:[%s1 + $0x190] sm:$0xff]
  %v81 = vld [vmem:[%s1 + $0x198] sm:$0xff]
  %v82 = vld [vmem:[%s1 + $0x1a0] sm:$0xff]
  %v83 = vld [vmem:[%s1 + $0x1a8] sm:$0xff]
  %v84 = vld [vmem:[%s1 + $0x1b0] sm:$0xff]
  %v85 = vld [vmem:[%s1 + $0x1b8] sm:$0xff]
  %v86 = vld [vmem:[%s1 + $0x1c0] sm:$0xff]
  %v87 = vld [vmem:[%s1 + $0x1c8] sm:$0xff]
  %v88 = vld [vmem:[%s1 + $0x1d0] sm:$0xff]
  %v89 = vld [vmem:[%s1 + $0x1d8] sm:$0xff]
  %v90 = vld [vmem:[%s1 + $0x1e0] sm:$0xff]
  %v91 = vld [vmem:[%s1 + $0x1e8] sm:$0xff]
  %v92 = vld [vmem:[%s1 + $0x1f0] sm:$0xff]
  %v93 = vld [vmem:[%s1 + $0x1f8] sm:$0xff]
  %v94 = vld [vmem:[%s2] sm:$0x1]
  %v96 = vlaneseq
  %v97 = vshrl.u32 %v96, 7
  %v98 = vsub.s32 0, %v97
  %v99 = vrot.slane %v94, %v98
  %101 = vmatprep.subr.mxu0 0.0
  %102 = vmatpush1.msra.mxu0 %v30
  %103 = vmatprep.subr.mxu0 0.0
  %104 = vmatpush1.msra.mxu0 %v31
  %105 = vmatprep.subr.mxu0 0.0
  %106 = vmatpush1.msra.mxu0 %v32
  %107 = vmatprep.subr.mxu0 0.0
  %108 = vmatpush1.msra.mxu0 %v33
  %109 = vmatprep.subr.mxu0 0.0
  %110 = vmatpush1.msra.mxu0 %v34
  %111 = vmatprep.subr.mxu0 0.0
  %112 = vmatpush1.msra.mxu0 %v35
  %113 = vmatprep.subr.mxu0 0.0
  %114 = vmatpush1.msra.mxu0 %v36
  %115 = vmatprep.subr.mxu0 0.0
  %116 = vmatpush1.msra.mxu0 %v37
  %117 = vmatprep.subr.mxu0 0.0
  %118 = vmatpush1.msra.mxu0 %v38
  %119 = vmatprep.subr.mxu0 0.0
  %120 = vmatpush1.msra.mxu0 %v39
  %121 = vmatprep.subr.mxu0 0.0
  %122 = vmatpush1.msra.mxu0 %v40
  %123 = vmatprep.subr.mxu0 0.0
  %124 = vmatpush1.msra.mxu0 %v41
  %125 = vmatprep.subr.mxu0 0.0
  %126 = vmatpush1.msra.mxu0 %v42
  %127 = vmatprep.subr.mxu0 0.0
  %128 = vmatpush1.msra.mxu0 %v43
  %129 = vmatprep.subr.mxu0 0.0
  %130 = vmatpush1.msra.mxu0 %v44
  %131 = vmatprep.subr.mxu0 0.0
  %132 = vmatpush1.msra.mxu0 %v45
  %133 = vmatprep.subr.mxu0 0.0
  %134 = vmatpush1.msra.mxu0 %v46
  %135 = vmatprep.subr.mxu0 0.0
  %136 = vmatpush1.msra.mxu0 %v47
  %137 = vmatprep.subr.mxu0 0.0
  %138 = vmatpush1.msra.mxu0 %v48
  %139 = vmatprep.subr.mxu0 0.0
  %140 = vmatpush1.msra.mxu0 %v49
  %141 = vmatprep.subr.mxu0 0.0
  %142 = vmatpush1.msra.mxu0 %v50
  %143 = vmatprep.subr.mxu0 0.0
  %144 = vmatpush1.msra.mxu0 %v51
  %145 = vmatprep.subr.mxu0 0.0
  %146 = vmatpush1.msra.mxu0 %v52
  %147 = vmatprep.subr.mxu0 0.0
  %148 = vmatpush1.msra.mxu0 %v53
  %149 = vmatprep.subr.mxu0 0.0
  %150 = vmatpush1.msra.mxu0 %v54
  %151 = vmatprep.subr.mxu0 0.0
  %152 = vmatpush1.msra.mxu0 %v55
  %153 = vmatprep.subr.mxu0 0.0
  %154 = vmatpush1.msra.mxu0 %v56
  %155 = vmatprep.subr.mxu0 0.0
  %156 = vmatpush1.msra.mxu0 %v57
  %157 = vmatprep.subr.mxu0 0.0
  %158 = vmatpush1.msra.mxu0 %v58
  %159 = vmatprep.subr.mxu0 0.0
  %160 = vmatpush1.msra.mxu0 %v59
  %161 = vmatprep.subr.mxu0 0.0
  %162 = vmatpush1.msra.mxu0 %v60
  %163 = vmatprep.subr.mxu0 0.0
  %164 = vmatpush1.msra.mxu0 %v61
  %165 = vmatprep.mubr.f32.mxu0 %v15
  %166 = vmatmul.mubr.f32.gmra.mrb[0].mxu0 %v14
  %v167 = vpop.f32.mrb[0].mxu0
  %v168 = vadd.f32 %v99, %v167
  %v169 = vpop.f32.mrb[0].mxu0
  %170 = vmatprep.mubr.f32.mxu0 %v19
  %171 = vmatmul.mubr.f32.gmra.mrb[0].mxu0 %v18
  %v172 = vpop.f32.mrb[0].mxu0
  %v173 = vadd.f32 %v99, %v172
  %v174 = vpop.f32.mrb[0].mxu0
  %175 = vmatprep.mubr.f32.mxu0 %v23
  %176 = vmatmul.mubr.f32.gmra.mrb[0].mxu0 %v22
  %v177 = vpop.f32.mrb[0].mxu0
  %v178 = vadd.f32 %v99, %v177
  %v179 = vpop.f32.mrb[0].mxu0
  %180 = vmatprep.mubr.f32.mxu0 %v27
  %181 = vmatmul.mubr.f32.gmra.mrb[0].mxu0 %v26
  %v182 = vpop.f32.mrb[0].mxu0
  %v183 = vadd.f32 %v99, %v182
  %v184 = vpop.f32.mrb[0].mxu0
  %185 = vdwg.mxu0
  %186 = vmatprep.subr.mxu0 0.0
  %187 = vmatpush1.msra.mxu0 %v62
  %188 = vmatprep.subr.mxu0 0.0
  %189 = vmatpush1.msra.mxu0 %v63
  %190 = vmatprep.subr.mxu0 0.0
  %191 = vmatpush1.msra.mxu0 %v64
  %192 = vmatprep.subr.mxu0 0.0
  %193 = vmatpush1.msra.mxu0 %v65
  %194 = vmatprep.subr.mxu0 0.0
  %195 = vmatpush1.msra.mxu0 %v66
  %196 = vmatprep.subr.mxu0 0.0
  %197 = vmatpush1.msra.mxu0 %v67
  %198 = vmatprep.subr.mxu0 0.0
  %199 = vmatpush1.msra.mxu0 %v68
  %200 = vmatprep.subr.mxu0 0.0
  %201 = vmatpush1.msra.mxu0 %v69
  %202 = vmatprep.subr.mxu0 0.0
  %203 = vmatpush1.msra.mxu0 %v70
  %204 = vmatprep.subr.mxu0 0.0
  %205 = vmatpush1.msra.mxu0 %v71
  %206 = vmatprep.subr.mxu0 0.0
  %207 = vmatpush1.msra.mxu0 %v72
  %208 = vmatprep.subr.mxu0 0.0
  %209 = vmatpush1.msra.mxu0 %v73
  %210 = vmatprep.subr.mxu0 0.0
  %211 = vmatpush1.msra.mxu0 %v74
  %212 = vmatprep.subr.mxu0 0.0
  %213 = vmatpush1.msra.mxu0 %v75
  %214 = vmatprep.subr.mxu0 0.0
  %215 = vmatpush1.msra.mxu0 %v76
  %216 = vmatprep.subr.mxu0 0.0
  %217 = vmatpush1.msra.mxu0 %v77
  %218 = vmatprep.subr.mxu0 0.0
  %219 = vmatpush1.msra.mxu0 %v78
  %220 = vmatprep.subr.mxu0 0.0
  %221 = vmatpush1.msra.mxu0 %v79
  %222 = vmatprep.subr.mxu0 0.0
  %223 = vmatpush1.msra.mxu0 %v80
  %224 = vmatprep.subr.mxu0 0.0
  %225 = vmatpush1.msra.mxu0 %v81
  %226 = vmatprep.subr.mxu0 0.0
  %227 = vmatpush1.msra.mxu0 %v82
  %228 = vmatprep.subr.mxu0 0.0
  %229 = vmatpush1.msra.mxu0 %v83
  %230 = vmatprep.subr.mxu0 0.0
  %231 = vmatpush1.msra.mxu0 %v84
  %232 = vmatprep.subr.mxu0 0.0
  %233 = vmatpush1.msra.mxu0 %v85
  %234 = vmatprep.subr.mxu0 0.0
  %235 = vmatpush1.msra.mxu0 %v86
  %236 = vmatprep.subr.mxu0 0.0
  %237 = vmatpush1.msra.mxu0 %v87
  %238 = vmatprep.subr.mxu0 0.0
  %239 = vmatpush1.msra.mxu0 %v88
  %240 = vmatprep.subr.mxu0 0.0
  %241 = vmatpush1.msra.mxu0 %v89
  %242 = vmatprep.subr.mxu0 0.0
  %243 = vmatpush1.msra.mxu0 %v90
  %244 = vmatprep.subr.mxu0 0.0
  %245 = vmatpush1.msra.mxu0 %v91
  %246 = vmatprep.subr.mxu0 0.0
  %247 = vmatpush1.msra.mxu0 %v92
  %248 = vmatprep.subr.mxu0 0.0
  %249 = vmatpush1.msra.mxu0 %v93
  %250 = vmatprep.mubr.f32.mxu0 %v17
  %251 = vmatmul.mubr.f32.gmra.mrb[0].mxu0 %v16
  %v252 = vpop.f32.mrb[0].mxu0
  %v253 = vadd.f32 %v168, %v252
  %v254 = vpop.f32.mrb[0].mxu0
  %255 = vmatprep.mubr.f32.mxu0 %v21
  %256 = vmatmul.mubr.f32.gmra.mrb[0].mxu0 %v20
  %v257 = vpop.f32.mrb[0].mxu0
  %v258 = vadd.f32 %v173, %v257
  %v259 = vpop.f32.mrb[0].mxu0
  %260 = vmatprep.mubr.f32.mxu0 %v25
  %261 = vmatmul.mubr.f32.gmra.mrb[0].mxu0 %v24
  %v262 = vpop.f32.mrb[0].mxu0
  %v263 = vadd.f32 %v178, %v262
  %v264 = vpop.f32.mrb[0].mxu0
  %265 = vmatprep.mubr.f32.mxu0 %v29
  %266 = vmatmul.mubr.f32.gmra.mrb[0].mxu0 %v28
  %v267 = vpop.f32.mrb[0].mxu0
  %v268 = vadd.f32 %v183, %v267
  %v269 = vpop.f32.mrb[0].mxu0
  %270 = vdwg.mxu0
  %271 = vst [vmem:[%s3] sm:$0xff] %v253
  %272 = vst [vmem:[%s3 + $0x8] sm:$0xff] %v258
  %273 = vst [vmem:[%s3 + $0x10] sm:$0xff] %v263
  %274 = vst [vmem:[%s3 + $0x18] sm:$0xff] %v268
  // Predicated region
  $region14: #{forward.2} parent=0 // pred_check
    _
  $region15: #{forward.2} parent=0 // pred_check_branch
    %276 = sbr.rel (0) target = $region17
  $region16: #{forward.2} parent=0 // pred_region
    _
  $region17: #{forward.2} parent=0 // pred_fallthru
    _
  // Predicated region
  $region18: #{forward.2} parent=0 // pred_check
    _
  $region19: #{forward.2} parent=0 // pred_check_branch
    %278 = sbr.rel (0) target = $region21
  $region20: #{forward.2} parent=0 // pred_region
    _
  $region21: #{forward.2} parent=0 // pred_fallthru
    _

// kernel: forward.3
$region0: #{forward.3}
  #allocation0 [shape = 'u32[]', space=smem, size = 0x4, offset = 0x4, fixed_abs, tag = 'smem constant byte address 0x4 - core index']
  #allocation1 [shape = 'u32[144,128]{1,0:T(1,128)}', space=vmem, size = 0x12000, scoped, tag = 'internal scratch']
  %s0 = inlined_call_operand.vmem [shape: bf16[32,512], index: 0, kind: input, shape index: {}]
  %s1 = inlined_call_operand.vmem [shape: bf16[512,128], index: 1, kind: input, shape index: {}]
  %s2 = inlined_call_operand.vmem [shape: f32[1,128], index: 2, kind: input, shape index: {}]
  %s3 = inlined_call_operand.vmem [shape: f32[32,128], index: 3, kind: output, shape index: {}]
  %s4 = sld [smem:[#allocation0]]
  $region22: #{forward.3} parent=0
    _
  %s6 = ssub.s32 1, %s4
  %s7 = scalar_select 0, %s6, %s4
  // Predicated region
  $region2: #{forward.3} parent=0 // pred_check
    _
  $region3: #{forward.3} parent=0 // pred_check_branch
    %9 = sbr.rel (0) target = $region5
  $region4: #{forward.3} parent=0 // pred_region
    _
  $region5: #{forward.3} parent=0 // pred_fallthru
    _
  // Predicated region
  $region6: #{forward.3} parent=0 // pred_check
    _
  $region7: #{forward.3} parent=0 // pred_check_branch
    %11 = sbr.rel (0) target = $region9
  $region8: #{forward.3} parent=0 // pred_region
    _
  $region9: #{forward.3} parent=0 // pred_fallthru
    _
  // Predicated region
  $region10: #{forward.3} parent=0 // pred_check
    _
  $region11: #{forward.3} parent=0 // pred_check_branch
    %13 = sbr.rel (0) target = $region13
  $region12: #{forward.3} parent=0 // pred_region
    _
  $region13: #{forward.3} parent=0 // pred_fallthru
    _
  %v15 = vld [vmem:[%s0] sm:$0xff]
  %v16 = vld [vmem:[%s0 + $0x8] sm:$0xff]
  %v17 = vld [vmem:[%s0 + $0x10] sm:$0xff]
  %v18 = vld [vmem:[%s0 + $0x18] sm:$0xff]
  %v19 = vld [vmem:[%s0 + $0x20] sm:$0xff]
  %v20 = vld [vmem:[%s0 + $0x28] sm:$0xff]
  %v21 = vld [vmem:[%s0 + $0x30] sm:$0xff]
  %v22 = vld [vmem:[%s0 + $0x38] sm:$0xff]
  %v23 = vld [vmem:[%s1] sm:$0xf]
  %v24 = vld [vmem:[%s1 + $0x4] sm:$0xf]
  %v25 = vld [vmem:[%s1 + $0x8] sm:$0xf]
  %v26 = vld [vmem:[%s1 + $0xc] sm:$0xf]
  %v27 = vld [vmem:[%s1 + $0x10] sm:$0xf]
  %v28 = vld [vmem:[%s1 + $0x14] sm:$0xf]
  %v29 = vld [vmem:[%s1 + $0x18] sm:$0xf]
  %v30 = vld [vmem:[%s1 + $0x1c] sm:$0xf]
  %v31 = vld [vmem:[%s1 + $0x20] sm:$0xf]
  %v32 = vld [vmem:[%s1 + $0x24] sm:$0xf]
  %v33 = vld [vmem:[%s1 + $0x28] sm:$0xf]
  %v34 = vld [vmem:[%s1 + $0x2c] sm:$0xf]
  %v35 = vld [vmem:[%s1 + $0x30] sm:$0xf]
  %v36 = vld [vmem:[%s1 + $0x34] sm:$0xf]
  %v37 = vld [vmem:[%s1 + $0x38] sm:$0xf]
  %v38 = vld [vmem:[%s1 + $0x3c] sm:$0xf]
  %v39 = vld [vmem:[%s1 + $0x40] sm:$0xf]
  %v40 = vld [vmem:[%s1 + $0x44] sm:$0xf]
  %v41 = vld [vmem:[%s1 + $0x48] sm:$0xf]
  %v42 = vld [vmem:[%s1 + $0x4c] sm:$0xf]
  %v43 = vld [vmem:[%s1 + $0x50] sm:$0xf]
  %v44 = vld [vmem:[%s1 + $0x54] sm:$0xf]
  %v45 = vld [vmem:[%s1 + $0x58] sm:$0xf]
  %v46 = vld [vmem:[%s1 + $0x5c] sm:$0xf]
  %v47 = vld [vmem:[%s1 + $0x60] sm:$0xf]
  %v48 = vld [vmem:[%s1 + $0x64] sm:$0xf]
  %v49 = vld [vmem:[%s1 + $0x68] sm:$0xf]
  %v50 = vld [vmem:[%s1 + $0x6c] sm:$0xf]
  %v51 = vld [vmem:[%s1 + $0x70] sm:$0xf]
  %v52 = vld [vmem:[%s1 + $0x74] sm:$0xf]
  %v53 = vld [vmem:[%s1 + $0x78] sm:$0xf]
  %v54 = vld [vmem:[%s1 + $0x7c] sm:$0xf]
  %v55 = vld [vmem:[%s1 + $0x80] sm:$0xf]
  %v56 = vld [vmem:[%s1 + $0x84] sm:$0xf]
  %v57 = vld [vmem:[%s1 + $0x88] sm:$0xf]
  %v58 = vld [vmem:[%s1 + $0x8c] sm:$0xf]
  %v59 = vld [vmem:[%s1 + $0x90] sm:$0xf]
  %v60 = vld [vmem:[%s1 + $0x94] sm:$0xf]
  %v61 = vld [vmem:[%s1 + $0x98] sm:$0xf]
  %v62 = vld [vmem:[%s1 + $0x9c] sm:$0xf]
  %v63 = vld [vmem:[%s1 + $0xa0] sm:$0xf]
  %v64 = vld [vmem:[%s1 + $0xa4] sm:$0xf]
  %v65 = vld [vmem:[%s1 + $0xa8] sm:$0xf]
  %v66 = vld [vmem:[%s1 + $0xac] sm:$0xf]
  %v67 = vld [vmem:[%s1 + $0xb0] sm:$0xf]
  %v68 = vld [vmem:[%s1 + $0xb4] sm:$0xf]
  %v69 = vld [vmem:[%s1 + $0xb8] sm:$0xf]
  %v70 = vld [vmem:[%s1 + $0xbc] sm:$0xf]
  %v71 = vld [vmem:[%s1 + $0xc0] sm:$0xf]
  %v72 = vld [vmem:[%s1 + $0xc4] sm:$0xf]
  %v73 = vld [vmem:[%s1 + $0xc8] sm:$0xf]
  %v74 = vld [vmem:[%s1 + $0xcc] sm:$0xf]
  %v75 = vld [vmem:[%s1 + $0xd0] sm:$0xf]
  %v76 = vld [vmem:[%s1 + $0xd4] sm:$0xf]
  %v77 = vld [vmem:[%s1 + $0xd8] sm:$0xf]
  %v78 = vld [vmem:[%s1 + $0xdc] sm:$0xf]
  %v79 = vld [vmem:[%s1 + $0xe0] sm:$0xf]
  %v80 = vld [vmem:[%s1 + $0xe4] sm:$0xf]
  %v81 = vld [vmem:[%s1 + $0xe8] sm:$0xf]
  %v82 = vld [vmem:[%s1 + $0xec] sm:$0xf]
  %v83 = vld [vmem:[%s1 + $0xf0] sm:$0xf]
  %v84 = vld [vmem:[%s1 + $0xf4] sm:$0xf]
  %v85 = vld [vmem:[%s1 + $0xf8] sm:$0xf]
  %v86 = vld [vmem:[%s1 + $0xfc] sm:$0xf]
  %v87 = vld [vmem:[%s2] sm:$0x1]
  %v89 = vlaneseq
  %v90 = vshrl.u32 %v89, 7
  %v91 = vsub.s32 0, %v90
  %v92 = vrot.slane %v87, %v91
  %v102 = vunpack.c.l.b16 %v15
  %v103 = vunpack.c.h.b16 %v15
  %v104 = vunpack.c.l.b16 %v16
  %v105 = vunpack.c.h.b16 %v16
  %v106 = vunpack.c.l.b16 %v17
  %v107 = vunpack.c.h.b16 %v17
  %v108 = vunpack.c.l.b16 %v18
  %v109 = vunpack.c.h.b16 %v18
  %v110 = vunpack.c.l.b16 %v19
  %v111 = vunpack.c.h.b16 %v19
  %v112 = vunpack.c.l.b16 %v20
  %v113 = vunpack.c.h.b16 %v20
  %v114 = vunpack.c.l.b16 %v21
  %v115 = vunpack.c.h.b16 %v21
  %v116 = vunpack.c.l.b16 %v22
  %v117 = vunpack.c.h.b16 %v22
  %v118 = vpack.c.b16 %v106, %v102
  %v119 = vpack.c.b16 %v107, %v103
  %v120 = vpack.c.b16 %v108, %v104
  %v121 = vpack.c.b16 %v109, %v105
  %v122 = vpack.c.b16 %v114, %v110
  %v123 = vpack.c.b16 %v115, %v111
  %v124 = vpack.c.b16 %v116, %v112
  %v125 = vpack.c.b16 %v117, %v113
  %v198 = vunpack.c.l.b16 %v23
  %v199 = vunpack.c.l.b16 %v24
  %v200 = vunpack.c.l.b16 %v25
  %v201 = vunpack.c.l.b16 %v26
  %v202 = vunpack.c.l.b16 %v27
  %v203 = vunpack.c.l.b16 %v28
  %v204 = vunpack.c.l.b16 %v29
  %v205 = vunpack.c.l.b16 %v30
  %v206 = vunpack.c.l.b16 %v31
  %v207 = vunpack.c.l.b16 %v32
  %v208 = vunpack.c.l.b16 %v33
  %v209 = vunpack.c.l.b16 %v34
  %v210 = vunpack.c.l.b16 %v35
  %v211 = vunpack.c.l.b16 %v36
  %v212 = vunpack.c.l.b16 %v37
  %v213 = vunpack.c.l.b16 %v38
  %v214 = vunpack.c.l.b16 %v39
  %v215 = vunpack.c.l.b16 %v40
  %v216 = vunpack.c.l.b16 %v41
  %v217 = vunpack.c.l.b16 %v42
  %v218 = vunpack.c.l.b16 %v43
  %v219 = vunpack.c.l.b16 %v44
  %v220 = vunpack.c.l.b16 %v45
  %v221 = vunpack.c.l.b16 %v46
  %v222 = vunpack.c.l.b16 %v47
  %v223 = vunpack.c.l.b16 %v48
  %v224 = vunpack.c.l.b16 %v49
  %v225 = vunpack.c.l.b16 %v50
  %v226 = vunpack.c.l.b16 %v51
  %v227 = vunpack.c.l.b16 %v52
  %v228 = vunpack.c.l.b16 %v53
  %v229 = vunpack.c.l.b16 %v54
  %v230 = vunpack.c.l.b16 %v55
  %v231 = vunpack.c.l.b16 %v56
  %v232 = vunpack.c.l.b16 %v57
  %v233 = vunpack.c.l.b16 %v58
  %v234 = vunpack.c.l.b16 %v59
  %v235 = vunpack.c.l.b16 %v60
  %v236 = vunpack.c.l.b16 %v61
  %v237 = vunpack.c.l.b16 %v62
  %v238 = vunpack.c.l.b16 %v63
  %v239 = vunpack.c.l.b16 %v64
  %v240 = vunpack.c.l.b16 %v65
  %v241 = vunpack.c.l.b16 %v66
  %v242 = vunpack.c.l.b16 %v67
  %v243 = vunpack.c.l.b16 %v68
  %v244 = vunpack.c.l.b16 %v69
  %v245 = vunpack.c.l.b16 %v70
  %v246 = vunpack.c.l.b16 %v71
  %v247 = vunpack.c.l.b16 %v72
  %v248 = vunpack.c.l.b16 %v73
  %v249 = vunpack.c.l.b16 %v74
  %v250 = vunpack.c.l.b16 %v75
  %v251 = vunpack.c.l.b16 %v76
  %v252 = vunpack.c.l.b16 %v77
  %v253 = vunpack.c.l.b16 %v78
  %v254 = vunpack.c.l.b16 %v79
  %v255 = vunpack.c.l.b16 %v80
  %v256 = vunpack.c.l.b16 %v81
  %v257 = vunpack.c.l.b16 %v82
  %v258 = vunpack.c.l.b16 %v83
  %v259 = vunpack.c.l.b16 %v84
  %v260 = vunpack.c.l.b16 %v85
  %v261 = vunpack.c.l.b16 %v86
  %v262 = vpack.c.b16 %v199, %v198
  %v263 = vpack.c.b16 %v201, %v200
  %v264 = vpack.c.b16 %v203, %v202
  %v265 = vpack.c.b16 %v205, %v204
  %v266 = vpack.c.b16 %v207, %v206
  %v267 = vpack.c.b16 %v209, %v208
  %v268 = vpack.c.b16 %v211, %v210
  %v269 = vpack.c.b16 %v213, %v212
  %v270 = vpack.c.b16 %v215, %v214
  %v271 = vpack.c.b16 %v217, %v216
  %v272 = vpack.c.b16 %v219, %v218
  %v273 = vpack.c.b16 %v221, %v220
  %v274 = vpack.c.b16 %v223, %v222
  %v275 = vpack.c.b16 %v225, %v224
  %v276 = vpack.c.b16 %v227, %v226
  %v277 = vpack.c.b16 %v229, %v228
  %v278 = vpack.c.b16 %v231, %v230
  %v279 = vpack.c.b16 %v233, %v232
  %v280 = vpack.c.b16 %v235, %v234
  %v281 = vpack.c.b16 %v237, %v236
  %v282 = vpack.c.b16 %v239, %v238
  %v283 = vpack.c.b16 %v241, %v240
  %v284 = vpack.c.b16 %v243, %v242
  %v285 = vpack.c.b16 %v245, %v244
  %v286 = vpack.c.b16 %v247, %v246
  %v287 = vpack.c.b16 %v249, %v248
  %v288 = vpack.c.b16 %v251, %v250
  %v289 = vpack.c.b16 %v253, %v252
  %v290 = vpack.c.b16 %v255, %v254
  %v291 = vpack.c.b16 %v257, %v256
  %v292 = vpack.c.b16 %v259, %v258
  %v293 = vpack.c.b16 %v261, %v260
  %326 = vmatprep.subr.bf16.mxu0 0
  %327 = vmatpush1.bf16.msra.mxu0 %v262
  %328 = vmatprep.subr.bf16.mxu0 0
  %329 = vmatpush1.bf16.msra.mxu0 %v263
  %330 = vmatprep.subr.bf16.mxu0 0
  %331 = vmatpush1.bf16.msra.mxu0 %v264
  %332 = vmatprep.subr.bf16.mxu0 0
  %333 = vmatpush1.bf16.msra.mxu0 %v265
  %334 = vmatprep.subr.bf16.mxu0 0
  %335 = vmatpush1.bf16.msra.mxu0 %v266
  %336 = vmatprep.subr.bf16.mxu0 0
  %337 = vmatpush1.bf16.msra.mxu0 %v267
  %338 = vmatprep.subr.bf16.mxu0 0
  %339 = vmatpush1.bf16.msra.mxu0 %v268
  %340 = vmatprep.subr.bf16.mxu0 0
  %341 = vmatpush1.bf16.msra.mxu0 %v269
  %342 = vmatprep.subr.bf16.mxu0 0
  %343 = vmatpush1.bf16.msra.mxu0 %v270
  %344 = vmatprep.subr.bf16.mxu0 0
  %345 = vmatpush1.bf16.msra.mxu0 %v271
  %346 = vmatprep.subr.bf16.mxu0 0
  %347 = vmatpush1.bf16.msra.mxu0 %v272
  %348 = vmatprep.subr.bf16.mxu0 0
  %349 = vmatpush1.bf16.msra.mxu0 %v273
  %350 = vmatprep.subr.bf16.mxu0 0
  %351 = vmatpush1.bf16.msra.mxu0 %v274
  %352 = vmatprep.subr.bf16.mxu0 0
  %353 = vmatpush1.bf16.msra.mxu0 %v275
  %354 = vmatprep.subr.bf16.mxu0 0
  %355 = vmatpush1.bf16.msra.mxu0 %v276
  %356 = vmatprep.subr.bf16.mxu0 0
  %357 = vmatpush1.bf16.msra.mxu0 %v277
  %358 = vmatprep.mubr.bf16.mxu0 %v119
  %359 = vmatmul.mubr.bf16.gmra.mrb[0].mxu0 %v118
  %v360 = vpop.f32.mrb[0].mxu0
  %v361 = vadd.f32 %v92, %v360
  %v362 = vpop.f32.mrb[0].mxu0
  %v363 = vpop.f32.mrb[0].mxu0
  %v364 = vadd.f32 %v92, %v363
  %v365 = vpop.f32.mrb[0].mxu0
  %366 = vmatprep.mubr.bf16.mxu0 %v123
  %367 = vmatmul.mubr.bf16.gmra.mrb[0].mxu0 %v122
  %v368 = vpop.f32.mrb[0].mxu0
  %v369 = vadd.f32 %v92, %v368
  %v370 = vpop.f32.mrb[0].mxu0
  %v371 = vpop.f32.mrb[0].mxu0
  %v372 = vadd.f32 %v92, %v371
  %v373 = vpop.f32.mrb[0].mxu0
  %374 = vdwg.mxu0
  %375 = vmatprep.subr.bf16.mxu0 0
  %376 = vmatpush1.bf16.msra.mxu0 %v278
  %377 = vmatprep.subr.bf16.mxu0 0
  %378 = vmatpush1.bf16.msra.mxu0 %v279
  %379 = vmatprep.subr.bf16.mxu0 0
  %380 = vmatpush1.bf16.msra.mxu0 %v280
  %381 = vmatprep.subr.bf16.mxu0 0
  %382 = vmatpush1.bf16.msra.mxu0 %v281
  %383 = vmatprep.subr.bf16.mxu0 0
  %384 = vmatpush1.bf16.msra.mxu0 %v282
  %385 = vmatprep.subr.bf16.mxu0 0
  %386 = vmatpush1.bf16.msra.mxu0 %v283
  %387 = vmatprep.subr.bf16.mxu0 0
  %388 = vmatpush1.bf16.msra.mxu0 %v284
  %389 = vmatprep.subr.bf16.mxu0 0
  %390 = vmatpush1.bf16.msra.mxu0 %v285
  %391 = vmatprep.subr.bf16.mxu0 0
  %392 = vmatpush1.bf16.msra.mxu0 %v286
  %393 = vmatprep.subr.bf16.mxu0 0
  %394 = vmatpush1.bf16.msra.mxu0 %v287
  %395 = vmatprep.subr.bf16.mxu0 0
  %396 = vmatpush1.bf16.msra.mxu0 %v288
  %397 = vmatprep.subr.bf16.mxu0 0
  %398 = vmatpush1.bf16.msra.mxu0 %v289
  %399 = vmatprep.subr.bf16.mxu0 0
  %400 = vmatpush1.bf16.msra.mxu0 %v290
  %401 = vmatprep.subr.bf16.mxu0 0
  %402 = vmatpush1.bf16.msra.mxu0 %v291
  %403 = vmatprep.subr.bf16.mxu0 0
  %404 = vmatpush1.bf16.msra.mxu0 %v292
  %405 = vmatprep.subr.bf16.mxu0 0
  %406 = vmatpush1.bf16.msra.mxu0 %v293
  %407 = vmatprep.mubr.bf16.mxu0 %v121
  %408 = vmatmul.mubr.bf16.gmra.mrb[0].mxu0 %v120
  %v409 = vpop.f32.mrb[0].mxu0
  %v410 = vadd.f32 %v361, %v409
  %v411 = vpop.f32.mrb[0].mxu0
  %v412 = vpop.f32.mrb[0].mxu0
  %v413 = vadd.f32 %v364, %v412
  %v414 = vpop.f32.mrb[0].mxu0
  %415 = vmatprep.mubr.bf16.mxu0 %v125
  %416 = vmatmul.mubr.bf16.gmra.mrb[0].mxu0 %v124
  %v417 = vpop.f32.mrb[0].mxu0
  %v418 = vadd.f32 %v369, %v417
  %v419 = vpop.f32.mrb[0].mxu0
  %v420 = vpop.f32.mrb[0].mxu0
  %v421 = vadd.f32 %v372, %v420
  %v422 = vpop.f32.mrb[0].mxu0
  %423 = vdwg.mxu0
  %v424 = vmax.f32 %v410, 0.0
  %v425 = vmax.f32 %v413, 0.0
  %v426 = vmax.f32 %v418, 0.0
  %v427 = vmax.f32 %v421, 0.0
  %428 = vst [vmem:[%s3] sm:$0xff] %v424
  %429 = vst [vmem:[%s3 + $0x8] sm:$0xff] %v425
  %430 = vst [vmem:[%s3 + $0x10] sm:$0xff] %v426
  %431 = vst [vmem:[%s3 + $0x18] sm:$0xff] %v427
  // Predicated region
  $region14: #{forward.3} parent=0 // pred_check
    _
  $region15: #{forward.3} parent=0 // pred_check_branch
    %433 = sbr.rel (0) target = $region17
  $region16: #{forward.3} parent=0 // pred_region
    _
  $region17: #{forward.3} parent=0 // pred_fallthru
    _
  // Predicated region
  $region18: #{forward.3} parent=0 // pred_check
    _
  $region19: #{forward.3} parent=0 // pred_check_branch
    %435 = sbr.rel (0) target = $region21
  $region20: #{forward.3} parent=0 // pred_region
    _
  $region21: #{forward.3} parent=0 // pred_fallthru
    _

</llo_original>
